<compile_context>
chip_gen: v5e
topology: v5e:2x2
jax: 0.10.0
libtpu: 0.0.40
codegen_flags: <defaults>
</compile_context>

<pallas_src>
import jax
import jax.numpy as jnp
from jax import lax
from jax.experimental import pallas as pl
from jax.experimental.pallas import tpu as pltpu


def temporal_kernel(x_ref,        # (T, bB, D)  time-major input block (bf16)
                    w_comb_ref,   # (D, H)      fused embed+input-hidden weight (bf16)
                    b_all_ref,    # (1, H)      fused bias b_emb@W_ih^T+b_ih+b_hh (f32)
                    w_hh_ref,     # (H, H)      recurrent weight, pre-transposed (bf16)
                    w_fc_ref,     # (H, Opad)   lane-padded output head (f32)
                    b_fc_ref,     # (1, Opad)   (f32)
                    out_ref):     # (bB, Opad)
    T, bB, D = x_ref.shape
    H = w_hh_ref.shape[0]

    w_comb = w_comb_ref[...]      # hoisted weight loads
    b_all = b_all_ref[...]
    w_hh = w_hh_ref[...]

    # ---- input path hoisted off the serial recurrence -----------------------
    # Produce the pre-activation for every timestep before the recurrence, as a
    # time-major list so the per-step read is free.
    if bB % 16 == 0:
        # Layout-trivial flatten (bf16 sublane tile = 16): ONE big MXU matmul
        # for all timesteps, then free 8-aligned static row slices per step.
        x_flat = x_ref[...].reshape(T * bB, D)
        proj_flat = (jnp.dot(x_flat, w_comb, preferred_element_type=jnp.float32)
                     + b_all)                                   # (T*bB, H) f32
        projs = [proj_flat[t * bB:(t + 1) * bB] for t in range(T)]
    else:
        # Tiny / unaligned batch blocks: T hoisted dots sharing the same RHS
        # (weights stay resident in the MXU -> same throughput as the single
        # flattened matmul) and no in-kernel relayout.  x_ref[t] is a free
        # leading-dim slice because x is time-major.
        projs = [jnp.dot(x_ref[t], w_comb, preferred_element_type=jnp.float32)
                 + b_all for t in range(T)]

    def step(h_f32, p_t):
        # tanh output is in [-1, 1] -> bf16-safe at the MXU; f32 accumulate.
        return jnp.tanh(p_t + jnp.dot(h_f32.astype(jnp.bfloat16), w_hh,
                                      preferred_element_type=jnp.float32))

    if T <= 16:
        # ---- fully unrolled recurrence (cross-step scheduler visibility) ----
        # Sub-tile the batch so the EUP (tanh) of sub-tile j overlaps the MXU
        # push of sub-tile j-1; only when each sub-tile keeps >= 8 sublanes.
        # h0 == 0, so step 0 needs no recurrent matmul.
        n_sub = 1
        for cand in (4, 2):
            if bB % (8 * cand) == 0:
                n_sub = cand
                break
        sub = bB // n_sub
        hs = [jnp.tanh(projs[0][j * sub:(j + 1) * sub]) for j in range(n_sub)]
        for t in range(1, T):
            hs = [step(hs[j], projs[t][j * sub:(j + 1) * sub])
                  for j in range(n_sub)]
        h = hs[0] if n_sub == 1 else jnp.concatenate(hs, axis=0)
    else:
        # Longer sequences: moderate unroll, bounded live ranges.
        proj_arr = jnp.stack(projs)                  # (T, bB, H) leading-dim stack
        h = lax.fori_loop(
            1, T,
            lambda t, h: step(h, lax.dynamic_index_in_dim(proj_arr, t, 0,
                                                          keepdims=False)),
            jnp.tanh(projs[0]), unroll=2)

    # ---- output head on the last hidden state (lane-dense, 128-padded) -----
    out_ref[...] = (jnp.dot(h, w_fc_ref[...], preferred_element_type=jnp.float32)
                    + b_fc_ref[...]).astype(out_ref.dtype)


def _default_batch_block(B):
    """v7x has 2 TensorCores: give the 'parallel' batch axis >= 2 blocks once a
    block keeps a multiple of 8 sublanes.  v5e/v6e (single TC): one big block
    amortizes the latency-bound recurrence and per-grid-step overhead."""
    try:
        kind = jax.devices()[0].device_kind.lower()
    except Exception:
        kind = ""
    if "v7" in kind and B % 16 == 0:
        return B // 2
    return B


def temporal_model(x, params, *, batch_block=None):
    """x: (B, T, vector_dim) float32, batch-first like the PyTorch module."""
    B, T, D = x.shape
    H = params["w_hh"].shape[0]
    O = params["w_fc"].shape[0]
    O_pad = max(128, ((O + 127) // 128) * 128)      # lane-dense head/output

    # ---- one-time wrapper-side weight fusion (f32), cast at the boundary ---
    # PyTorch Linear stores (out, in); RNN weights are (H, E) / (H, H).
    w_ih_t = params["w_ih"].T                                     # (E, H)
    w_comb = (params["w_emb"].T @ w_ih_t).astype(jnp.bfloat16)    # (D, H) fused in f32
    b_all = (params["b_emb"] @ w_ih_t + params["b_ih"]
             + params["b_hh"]).reshape(1, H).astype(jnp.float32)  # (1, H)
    w_hh = params["w_hh"].T.astype(jnp.bfloat16)                  # (H, H)
    w_fc = jnp.zeros((H, O_pad), jnp.float32).at[:, :O].set(params["w_fc"].T)
    b_fc = jnp.zeros((1, O_pad), jnp.float32).at[:, :O].set(params["b_fc"])

    # Time-major, bf16 input: per-step slices in-kernel are contiguous and the
    # x DMA traffic halves.  (One fused transpose+cast XLA op in the wrapper.)
    x_tm = jnp.swapaxes(x, 0, 1).astype(jnp.bfloat16)             # (T, B, D)

    bb = _default_batch_block(B) if batch_block is None else batch_block
    n_blocks = pl.cdiv(B, bb)
    # NOTE: if B % bb != 0, the padded tail rows of the last block carry
    # unspecified data through the recurrence; tanh bounds them and Pallas
    # never writes past row B, so valid outputs are unaffected.

    # Grid-invariant operands: single-buffer when the grid has several batch
    # blocks (no re-DMA / no 2x VMEM); with one block the default is fine.
    if n_blocks > 1:
        def wspec(shape, imap):
            return pl.BlockSpec(shape, imap, pipeline_mode=pl.Buffered(1))
    else:
        def wspec(shape, imap):
            return pl.BlockSpec(shape, imap)

    # VMEM budget (v7x: 64 MiB physical, 32 MiB default scoped): raise the
    # scoped limit to what the blocks need with headroom, capped at 48 MiB.
    est = (2 * bb * T * D * 2                    # x block (bf16, double-buffered)
           + D * H * 2 + H * 4                   # w_comb (bf16) + b_all
           + H * H * 2                           # w_hh (bf16)
           + H * O_pad * 4 + O_pad * 4           # w_fc + b_fc
           + 2 * bb * O_pad * 4                  # out block (double-buffered)
           + 3 * T * bb * H * 4)                 # projections + temporaries
    vmem_limit = int(min(max(32 * 1024 * 1024, 2 * est), 48 * 1024 * 1024))

    out = pl.pallas_call(
        temporal_kernel,
        out_shape=jax.ShapeDtypeStruct((B, O_pad), jnp.float32),
        grid=(n_blocks,),
        in_specs=[
            pl.BlockSpec((T, bb, D), lambda i: (0, i, 0)),        # batch-tiled x
            wspec((D, H), lambda i: (0, 0)),                      # w_comb
            wspec((1, H), lambda i: (0, 0)),                      # b_all
            wspec((H, H), lambda i: (0, 0)),                      # w_hh
            wspec((H, O_pad), lambda i: (0, 0)),                  # w_fc (padded)
            wspec((1, O_pad), lambda i: (0, 0)),                  # b_fc (padded)
        ],
        out_specs=pl.BlockSpec((bb, O_pad), lambda i: (i, 0)),
        compiler_params=pltpu.CompilerParams(
            dimension_semantics=("parallel",),                    # batch-parallel (v7x 2-TC)
            vmem_limit_bytes=vmem_limit),
    )(x_tm, w_comb, b_all, w_hh, w_fc, b_fc)
    return out[:, :O]


def temporal_model_ref(x, params):
    """Pure-JAX reference matching PyTorch semantics (unfused, f32)."""
    emb = x @ params["w_emb"].T + params["b_emb"]                 # (B, T, E)
    B = x.shape[0]
    H = params["w_hh"].shape[0]

    def cell(h, e_t):
        h_new = jnp.tanh(e_t @ params["w_ih"].T + params["b_ih"]
                         + h @ params["w_hh"].T + params["b_hh"])
        return h_new, h_new

    h0 = jnp.zeros((B, H), dtype=jnp.float32)
    h_last, _ = lax.scan(cell, h0, jnp.transpose(emb, (1, 0, 2)))
    return h_last @ params["w_fc"].T + params["b_fc"]


def init_params(key, vector_dim, embedding_dim, hidden_size, output_size):
    ks = jax.random.split(key, 8)
    u = lambda k, shape, fan_in: jax.random.uniform(
        k, shape, jnp.float32, -1.0 / jnp.sqrt(fan_in), 1.0 / jnp.sqrt(fan_in))
    return {
        "w_emb": u(ks[0], (embedding_dim, vector_dim), vector_dim),
        "b_emb": u(ks[1], (embedding_dim,), vector_dim),
        "w_ih":  u(ks[2], (hidden_size, embedding_dim), hidden_size),
        "b_ih":  u(ks[3], (hidden_size,), hidden_size),
        "w_hh":  u(ks[4], (hidden_size, hidden_size), hidden_size),
        "b_hh":  u(ks[5], (hidden_size,), hidden_size),
        "w_fc":  u(ks[6], (output_size, hidden_size), hidden_size),
        "b_fc":  u(ks[7], (output_size,), hidden_size),
    }


if __name__ == "__main__":
    B, T = 2, 8
    vector_dim, embedding_dim, hidden_size, output_size = 16, 32, 32, 8

    key = jax.random.PRNGKey(0)
    k_x, k_p = jax.random.split(key)
    x = jax.random.normal(k_x, (B, T, vector_dim), dtype=jnp.float32)
    params = init_params(k_p, vector_dim, embedding_dim, hidden_size, output_size)

    out = jax.block_until_ready(temporal_model(x, params))
    ref = jax.block_until_ready(temporal_model_ref(x, params))

    assert out.shape == (B, output_size)
    # bf16 MXU operands (x, W_comb, W_hh) + the f32 W_emb@W_ih fusion
    # reassociate/round the sums; error stays well below this tolerance.
    assert jnp.allclose(out, ref, atol=5e-2, rtol=5e-2), (out, ref)
    print("KERNEL_OK")
</pallas_src>

<mosaic_0001>
module attributes {stable_mosaic.version = 11 : i64} {
  func.func @temporal_kernel(%arg0: i32, %arg1: memref<8x2x16xbf16, #tpu.memory_space<vmem>>, %arg2: memref<16x32xbf16, #tpu.memory_space<vmem>>, %arg3: memref<1x32xf32, #tpu.memory_space<vmem>>, %arg4: memref<32x32xbf16, #tpu.memory_space<vmem>>, %arg5: memref<32x128xf32, #tpu.memory_space<vmem>>, %arg6: memref<1x128xf32, #tpu.memory_space<vmem>>, %arg7: memref<2x128xf32, #tpu.memory_space<vmem>>) attributes {dimension_semantics = [#tpu.dimension_semantics<parallel>], iteration_bounds = array<i64: 1>, scalar_prefetch = 0 : i64, scratch_operands = 0 : i64, tpu.core_type = #tpu.core_type<tc>, window_params = [{transform_indices = @transform_0, window_bounds = array<i64: 8, 2, 16>}, {pipeline_mode = #tpu.pipeline_mode<synchronous>, transform_indices = @transform_1, window_bounds = array<i64: 16, 32>}, {pipeline_mode = #tpu.pipeline_mode<synchronous>, transform_indices = @transform_2, window_bounds = array<i64: 1, 32>}, {pipeline_mode = #tpu.pipeline_mode<synchronous>, transform_indices = @transform_3, window_bounds = array<i64: 32, 32>}, {pipeline_mode = #tpu.pipeline_mode<synchronous>, transform_indices = @transform_4, window_bounds = array<i64: 32, 128>}, {pipeline_mode = #tpu.pipeline_mode<synchronous>, transform_indices = @transform_5, window_bounds = array<i64: 1, 128>}, {transform_indices = @transform_6, window_bounds = array<i64: 2, 128>}]} {
    %c0 = arith.constant 0 : index
    %c0_0 = arith.constant 0 : index
    %0 = vector.load %arg2[%c0, %c0_0] : memref<16x32xbf16, #tpu.memory_space<vmem>>, vector<16x32xbf16>
    %c0_1 = arith.constant 0 : index
    %c0_2 = arith.constant 0 : index
    %1 = vector.load %arg3[%c0_1, %c0_2] : memref<1x32xf32, #tpu.memory_space<vmem>>, vector<1x32xf32>
    %c0_3 = arith.constant 0 : index
    %c0_4 = arith.constant 0 : index
    %2 = vector.load %arg4[%c0_3, %c0_4] : memref<32x32xbf16, #tpu.memory_space<vmem>>, vector<32x32xbf16>
    %c0_5 = arith.constant 0 : index
    %c0_6 = arith.constant 0 : index
    %c0_7 = arith.constant 0 : index
    %3 = vector.load %arg1[%c0_5, %c0_6, %c0_7] : memref<8x2x16xbf16, #tpu.memory_space<vmem>>, vector<1x2x16xbf16>
    %4 = vector.shape_cast %3 : vector<1x2x16xbf16> to vector<2x16xbf16>
    %cst = arith.constant dense<0.000000e+00> : vector<2x32xf32>
    %5 = tpu.matmul %4, %0, %cst {dimension_numbers = #tpu.dot_dimension_numbers<[1], [0], [0], [1], [0, 0, 1, 1], [], []>} : vector<2x16xbf16>, vector<16x32xbf16>, vector<2x32xf32> -> vector<2x32xf32>
    %6 = vector.broadcast %1 : vector<1x32xf32> to vector<2x32xf32>
    %7 = arith.addf %5, %6 : vector<2x32xf32>
    %c1 = arith.constant 1 : index
    %c0_8 = arith.constant 0 : index
    %c0_9 = arith.constant 0 : index
    %8 = vector.load %arg1[%c1, %c0_8, %c0_9] : memref<8x2x16xbf16, #tpu.memory_space<vmem>>, vector<1x2x16xbf16>
    %9 = vector.shape_cast %8 : vector<1x2x16xbf16> to vector<2x16xbf16>
    %cst_10 = arith.constant dense<0.000000e+00> : vector<2x32xf32>
    %10 = tpu.matmul %9, %0, %cst_10 {dimension_numbers = #tpu.dot_dimension_numbers<[1], [0], [0], [1], [0, 0, 1, 1], [], []>} : vector<2x16xbf16>, vector<16x32xbf16>, vector<2x32xf32> -> vector<2x32xf32>
    %11 = vector.broadcast %1 : vector<1x32xf32> to vector<2x32xf32>
    %12 = arith.addf %10, %11 : vector<2x32xf32>
    %c2 = arith.constant 2 : index
    %c0_11 = arith.constant 0 : index
    %c0_12 = arith.constant 0 : index
    %13 = vector.load %arg1[%c2, %c0_11, %c0_12] : memref<8x2x16xbf16, #tpu.memory_space<vmem>>, vector<1x2x16xbf16>
    %14 = vector.shape_cast %13 : vector<1x2x16xbf16> to vector<2x16xbf16>
    %cst_13 = arith.constant dense<0.000000e+00> : vector<2x32xf32>
    %15 = tpu.matmul %14, %0, %cst_13 {dimension_numbers = #tpu.dot_dimension_numbers<[1], [0], [0], [1], [0, 0, 1, 1], [], []>} : vector<2x16xbf16>, vector<16x32xbf16>, vector<2x32xf32> -> vector<2x32xf32>
    %16 = vector.broadcast %1 : vector<1x32xf32> to vector<2x32xf32>
    %17 = arith.addf %15, %16 : vector<2x32xf32>
    %c3 = arith.constant 3 : index
    %c0_14 = arith.constant 0 : index
    %c0_15 = arith.constant 0 : index
    %18 = vector.load %arg1[%c3, %c0_14, %c0_15] : memref<8x2x16xbf16, #tpu.memory_space<vmem>>, vector<1x2x16xbf16>
    %19 = vector.shape_cast %18 : vector<1x2x16xbf16> to vector<2x16xbf16>
    %cst_16 = arith.constant dense<0.000000e+00> : vector<2x32xf32>
    %20 = tpu.matmul %19, %0, %cst_16 {dimension_numbers = #tpu.dot_dimension_numbers<[1], [0], [0], [1], [0, 0, 1, 1], [], []>} : vector<2x16xbf16>, vector<16x32xbf16>, vector<2x32xf32> -> vector<2x32xf32>
    %21 = vector.broadcast %1 : vector<1x32xf32> to vector<2x32xf32>
    %22 = arith.addf %20, %21 : vector<2x32xf32>
    %c4 = arith.constant 4 : index
    %c0_17 = arith.constant 0 : index
    %c0_18 = arith.constant 0 : index
    %23 = vector.load %arg1[%c4, %c0_17, %c0_18] : memref<8x2x16xbf16, #tpu.memory_space<vmem>>, vector<1x2x16xbf16>
    %24 = vector.shape_cast %23 : vector<1x2x16xbf16> to vector<2x16xbf16>
    %cst_19 = arith.constant dense<0.000000e+00> : vector<2x32xf32>
    %25 = tpu.matmul %24, %0, %cst_19 {dimension_numbers = #tpu.dot_dimension_numbers<[1], [0], [0], [1], [0, 0, 1, 1], [], []>} : vector<2x16xbf16>, vector<16x32xbf16>, vector<2x32xf32> -> vector<2x32xf32>
    %26 = vector.broadcast %1 : vector<1x32xf32> to vector<2x32xf32>
    %27 = arith.addf %25, %26 : vector<2x32xf32>
    %c5 = arith.constant 5 : index
    %c0_20 = arith.constant 0 : index
    %c0_21 = arith.constant 0 : index
    %28 = vector.load %arg1[%c5, %c0_20, %c0_21] : memref<8x2x16xbf16, #tpu.memory_space<vmem>>, vector<1x2x16xbf16>
    %29 = vector.shape_cast %28 : vector<1x2x16xbf16> to vector<2x16xbf16>
    %cst_22 = arith.constant dense<0.000000e+00> : vector<2x32xf32>
    %30 = tpu.matmul %29, %0, %cst_22 {dimension_numbers = #tpu.dot_dimension_numbers<[1], [0], [0], [1], [0, 0, 1, 1], [], []>} : vector<2x16xbf16>, vector<16x32xbf16>, vector<2x32xf32> -> vector<2x32xf32>
    %31 = vector.broadcast %1 : vector<1x32xf32> to vector<2x32xf32>
    %32 = arith.addf %30, %31 : vector<2x32xf32>
    %c6 = arith.constant 6 : index
    %c0_23 = arith.constant 0 : index
    %c0_24 = arith.constant 0 : index
    %33 = vector.load %arg1[%c6, %c0_23, %c0_24] : memref<8x2x16xbf16, #tpu.memory_space<vmem>>, vector<1x2x16xbf16>
    %34 = vector.shape_cast %33 : vector<1x2x16xbf16> to vector<2x16xbf16>
    %cst_25 = arith.constant dense<0.000000e+00> : vector<2x32xf32>
    %35 = tpu.matmul %34, %0, %cst_25 {dimension_numbers = #tpu.dot_dimension_numbers<[1], [0], [0], [1], [0, 0, 1, 1], [], []>} : vector<2x16xbf16>, vector<16x32xbf16>, vector<2x32xf32> -> vector<2x32xf32>
    %36 = vector.broadcast %1 : vector<1x32xf32> to vector<2x32xf32>
    %37 = arith.addf %35, %36 : vector<2x32xf32>
    %c7 = arith.constant 7 : index
    %c0_26 = arith.constant 0 : index
    %c0_27 = arith.constant 0 : index
    %38 = vector.load %arg1[%c7, %c0_26, %c0_27] : memref<8x2x16xbf16, #tpu.memory_space<vmem>>, vector<1x2x16xbf16>
    %39 = vector.shape_cast %38 : vector<1x2x16xbf16> to vector<2x16xbf16>
    %cst_28 = arith.constant dense<0.000000e+00> : vector<2x32xf32>
    %40 = tpu.matmul %39, %0, %cst_28 {dimension_numbers = #tpu.dot_dimension_numbers<[1], [0], [0], [1], [0, 0, 1, 1], [], []>} : vector<2x16xbf16>, vector<16x32xbf16>, vector<2x32xf32> -> vector<2x32xf32>
    %41 = vector.broadcast %1 : vector<1x32xf32> to vector<2x32xf32>
    %42 = arith.addf %40, %41 : vector<2x32xf32>
    %43 = math.tanh %7 : vector<2x32xf32>
    %44 = arith.truncf %43 : vector<2x32xf32> to vector<2x32xbf16>
    %cst_29 = arith.constant dense<0.000000e+00> : vector<2x32xf32>
    %45 = tpu.matmul %44, %2, %cst_29 {dimension_numbers = #tpu.dot_dimension_numbers<[1], [0], [0], [1], [0, 0, 1, 1], [], []>} : vector<2x32xbf16>, vector<32x32xbf16>, vector<2x32xf32> -> vector<2x32xf32>
    %46 = arith.addf %12, %45 : vector<2x32xf32>
    %47 = math.tanh %46 : vector<2x32xf32>
    %48 = arith.truncf %47 : vector<2x32xf32> to vector<2x32xbf16>
    %cst_30 = arith.constant dense<0.000000e+00> : vector<2x32xf32>
    %49 = tpu.matmul %48, %2, %cst_30 {dimension_numbers = #tpu.dot_dimension_numbers<[1], [0], [0], [1], [0, 0, 1, 1], [], []>} : vector<2x32xbf16>, vector<32x32xbf16>, vector<2x32xf32> -> vector<2x32xf32>
    %50 = arith.addf %17, %49 : vector<2x32xf32>
    %51 = math.tanh %50 : vector<2x32xf32>
    %52 = arith.truncf %51 : vector<2x32xf32> to vector<2x32xbf16>
    %cst_31 = arith.constant dense<0.000000e+00> : vector<2x32xf32>
    %53 = tpu.matmul %52, %2, %cst_31 {dimension_numbers = #tpu.dot_dimension_numbers<[1], [0], [0], [1], [0, 0, 1, 1], [], []>} : vector<2x32xbf16>, vector<32x32xbf16>, vector<2x32xf32> -> vector<2x32xf32>
    %54 = arith.addf %22, %53 : vector<2x32xf32>
    %55 = math.tanh %54 : vector<2x32xf32>
    %56 = arith.truncf %55 : vector<2x32xf32> to vector<2x32xbf16>
    %cst_32 = arith.constant dense<0.000000e+00> : vector<2x32xf32>
    %57 = tpu.matmul %56, %2, %cst_32 {dimension_numbers = #tpu.dot_dimension_numbers<[1], [0], [0], [1], [0, 0, 1, 1], [], []>} : vector<2x32xbf16>, vector<32x32xbf16>, vector<2x32xf32> -> vector<2x32xf32>
    %58 = arith.addf %27, %57 : vector<2x32xf32>
    %59 = math.tanh %58 : vector<2x32xf32>
    %60 = arith.truncf %59 : vector<2x32xf32> to vector<2x32xbf16>
    %cst_33 = arith.constant dense<0.000000e+00> : vector<2x32xf32>
    %61 = tpu.matmul %60, %2, %cst_33 {dimension_numbers = #tpu.dot_dimension_numbers<[1], [0], [0], [1], [0, 0, 1, 1], [], []>} : vector<2x32xbf16>, vector<32x32xbf16>, vector<2x32xf32> -> vector<2x32xf32>
    %62 = arith.addf %32, %61 : vector<2x32xf32>
    %63 = math.tanh %62 : vector<2x32xf32>
    %64 = arith.truncf %63 : vector<2x32xf32> to vector<2x32xbf16>
    %cst_34 = arith.constant dense<0.000000e+00> : vector<2x32xf32>
    %65 = tpu.matmul %64, %2, %cst_34 {dimension_numbers = #tpu.dot_dimension_numbers<[1], [0], [0], [1], [0, 0, 1, 1], [], []>} : vector<2x32xbf16>, vector<32x32xbf16>, vector<2x32xf32> -> vector<2x32xf32>
    %66 = arith.addf %37, %65 : vector<2x32xf32>
    %67 = math.tanh %66 : vector<2x32xf32>
    %68 = arith.truncf %67 : vector<2x32xf32> to vector<2x32xbf16>
    %cst_35 = arith.constant dense<0.000000e+00> : vector<2x32xf32>
    %69 = tpu.matmul %68, %2, %cst_35 {dimension_numbers = #tpu.dot_dimension_numbers<[1], [0], [0], [1], [0, 0, 1, 1], [], []>} : vector<2x32xbf16>, vector<32x32xbf16>, vector<2x32xf32> -> vector<2x32xf32>
    %70 = arith.addf %42, %69 : vector<2x32xf32>
    %71 = math.tanh %70 : vector<2x32xf32>
    %c0_36 = arith.constant 0 : index
    %c0_37 = arith.constant 0 : index
    %72 = vector.load %arg5[%c0_36, %c0_37] : memref<32x128xf32, #tpu.memory_space<vmem>>, vector<32x128xf32>
    %cst_38 = arith.constant dense<0.000000e+00> : vector<2x128xf32>
    %73 = tpu.matmul %71, %72, %cst_38 {dimension_numbers = #tpu.dot_dimension_numbers<[1], [0], [0], [1], [0, 0, 1, 1], [], []>} : vector<2x32xf32>, vector<32x128xf32>, vector<2x128xf32> -> vector<2x128xf32>
    %c0_39 = arith.constant 0 : index
    %c0_40 = arith.constant 0 : index
    %74 = vector.load %arg6[%c0_39, %c0_40] : memref<1x128xf32, #tpu.memory_space<vmem>>, vector<1x128xf32>
    %75 = vector.broadcast %74 : vector<1x128xf32> to vector<2x128xf32>
    %76 = arith.addf %73, %75 : vector<2x128xf32>
    %c0_41 = arith.constant 0 : index
    %c0_42 = arith.constant 0 : index
    %77 = vector.load %arg7[%c0_41, %c0_42] : memref<2x128xf32, #tpu.memory_space<vmem>>, vector<2x128xf32>
    tpu.vector_store %arg7[%c0_41, %c0_42], %76 {strides = array<i32>} : memref<2x128xf32, #tpu.memory_space<vmem>>, vector<2x128xf32>,
    return
  }
  func.func @transform_0(%arg0: i32) -> (i32, i32, i32) {
    %c0_i32 = arith.constant 0 : i32
    %c0_i32_0 = arith.constant 0 : i32
    %c0_i32_1 = arith.constant 0 : i32
    return %c0_i32, %arg0, %c0_i32_0 : i32, i32, i32
  }
  func.func @transform_1(%arg0: i32) -> (i32, i32) {
    %c0_i32 = arith.constant 0 : i32
    %c0_i32_0 = arith.constant 0 : i32
    %c0_i32_1 = arith.constant 0 : i32
    return %c0_i32, %c0_i32_0 : i32, i32
  }
  func.func @transform_2(%arg0: i32) -> (i32, i32) {
    %c0_i32 = arith.constant 0 : i32
    %c0_i32_0 = arith.constant 0 : i32
    %c0_i32_1 = arith.constant 0 : i32
    return %c0_i32, %c0_i32_0 : i32, i32
  }
  func.func @transform_3(%arg0: i32) -> (i32, i32) {
    %c0_i32 = arith.constant 0 : i32
    %c0_i32_0 = arith.constant 0 : i32
    %c0_i32_1 = arith.constant 0 : i32
    return %c0_i32, %c0_i32_0 : i32, i32
  }
  func.func @transform_4(%arg0: i32) -> (i32, i32) {
    %c0_i32 = arith.constant 0 : i32
    %c0_i32_0 = arith.constant 0 : i32
    %c0_i32_1 = arith.constant 0 : i32
    return %c0_i32, %c0_i32_0 : i32, i32
  }
  func.func @transform_5(%arg0: i32) -> (i32, i32) {
    %c0_i32 = arith.constant 0 : i32
    %c0_i32_0 = arith.constant 0 : i32
    %c0_i32_1 = arith.constant 0 : i32
    return %c0_i32, %c0_i32_0 : i32, i32
  }
  func.func @transform_6(%arg0: i32) -> (i32, i32) {
    %c0_i32 = arith.constant 0 : i32
    %c0_i32_0 = arith.constant 0 : i32
    return %arg0, %c0_i32 : i32, i32
  }
}

</mosaic_0001>

<llo_original>
// kernel: tpu_custom_call.1
$region0: #{tpu_custom_call.1}
  #allocation0 [shape = 'u32[]', space=smem, size = 0x4, offset = 0x4, fixed_abs, tag = 'smem constant byte address 0x4 - core index']
  #allocation1 [shape = 'u32[72,128]{1,0:T(1,128)}', space=vmem, size = 0x9000, scoped, tag = 'internal scratch']
  %s0 = inlined_call_operand.hbm [shape: bf16[8,2,16], index: 0, kind: input, shape index: {}]
  %s1 = inlined_call_operand.hbm [shape: bf16[16,32], index: 1, kind: input, shape index: {}]
  %s2 = inlined_call_operand.vmem [shape: f32[1,32], index: 2, kind: input, shape index: {}]
  %s3 = inlined_call_operand.hbm [shape: bf16[32,32], index: 3, kind: input, shape index: {}]
  %s4 = inlined_call_operand.hbm [shape: f32[32,128], index: 4, kind: input, shape index: {}]
  %s5 = inlined_call_operand.vmem [shape: f32[1,128], index: 5, kind: input, shape index: {}]
  %s6 = inlined_call_operand.hbm [shape: f32[2,128], index: 6, kind: output, shape index: {}]
  %s7 = sld [smem:[#allocation0]]
  $region50: #{tpu_custom_call.1} parent=0
    _
  %s9 = ssub.s32 1, %s7
  %s10 = scalar_select 0, %s9, %s7
  $region1: #{tpu_custom_call.1} parent=0
    #allocation2 [shape = 'u8[4096]{0}', space=vmem, size = 0x1000, scoped, tag = 'input window, operand 0, single buffered']
    #allocation3 [shape = 's32[1]{0}', space=sflag, size = 0x4, scoped, tag = 'scoped memory for tpu_custom_call.1']
    #allocation4 [shape = 's32[1]{0}', space=sflag, size = 0x4, scoped, tag = 'scoped memory for tpu_custom_call.1']
    #allocation5 [shape = 'u8[4096]{0}', space=vmem, size = 0x1000, scoped, tag = 'input window, operand 1, single buffered']
    #allocation6 [shape = 's32[1]{0}', space=sflag, size = 0x4, scoped, tag = 'scoped memory for tpu_custom_call.1']
    #allocation7 [shape = 'u8[8192]{0}', space=vmem, size = 0x2000, scoped, tag = 'input window, operand 3, single buffered']
    #allocation8 [shape = 'u8[16384]{0}', space=vmem, size = 0x4000, scoped, tag = 'input window, operand 4, single buffered']
    #allocation9 [shape = 's32[1]{0}', space=sflag, size = 0x4, scoped, tag = 'scoped memory for tpu_custom_call.1']
    #allocation10 [shape = 'u8[1024]{0}', space=vmem, size = 0x400, scoped, tag = 'output window, operand 0, single buffered']
    %11 = vsyncpa [#allocation3], 0
    %12 = vsyncpa [#allocation6], 0
    %13 = vsyncpa [#allocation9], 0
    %14 = vsyncpa [#allocation4], 0
    // Predicated region
    $region2: #{tpu_custom_call.1} parent=1 // pred_check
      _
    $region3: #{tpu_custom_call.1} parent=1 // pred_check_branch
      %16 = sbr.rel (0) target = $region5
    $region4: #{tpu_custom_call.1} parent=1 // pred_region
      %18 = vsyncadd [#allocation3], 0
      %s19 = sshll.u32 %s0, 4
      %s20 = int_to_ptr.hbm [resolvable:$true] %s19
      %s21 = sshll.u32 [#allocation2], 4
      %s22 = int_to_ptr.vmem [resolvable:$true] %s21
      %27 = dma.hbm_to_vmem [thread:$0]  %s20, 128, %s22, [#allocation3], 16, 16, 1
    $region5: #{tpu_custom_call.1} parent=1 // pred_fallthru
      _
    // Predicated region
    $region6: #{tpu_custom_call.1} parent=1 // pred_check
      _
    $region7: #{tpu_custom_call.1} parent=1 // pred_check_branch
      %29 = sbr.rel (0) target = $region9
    $region8: #{tpu_custom_call.1} parent=1 // pred_region
      %31 = vsyncadd [#allocation6], 0
      %s32 = sshll.u32 %s1, 4
      %s33 = int_to_ptr.hbm [resolvable:$true] %s32
      %s34 = sshll.u32 [#allocation5], 4
      %s35 = int_to_ptr.vmem [resolvable:$true] %s34
      %40 = dma.hbm_to_vmem [thread:$0]  %s33, 128, %s35, [#allocation6], 64, 64, 4
    $region9: #{tpu_custom_call.1} parent=1 // pred_fallthru
      _
    // Predicated region
    $region10: #{tpu_custom_call.1} parent=1 // pred_check
      _
    $region11: #{tpu_custom_call.1} parent=1 // pred_check_branch
      %42 = sbr.rel (0) target = $region13
    $region12: #{tpu_custom_call.1} parent=1 // pred_region
      _
    $region13: #{tpu_custom_call.1} parent=1 // pred_fallthru
      _
    // Predicated region
    $region14: #{tpu_custom_call.1} parent=1 // pred_check
      _
    $region15: #{tpu_custom_call.1} parent=1 // pred_check_branch
      %44 = sbr.rel (0) target = $region17
    $region16: #{tpu_custom_call.1} parent=1 // pred_region
      %46 = vsyncadd [#allocation6], 0
      %s47 = sshll.u32 %s3, 4
      %s48 = int_to_ptr.hbm [resolvable:$true] %s47
      %s49 = sshll.u32 [#allocation7], 4
      %s50 = int_to_ptr.vmem [resolvable:$true] %s49
      %55 = dma.hbm_to_vmem [thread:$0]  %s48, 256, %s50, [#allocation6], 64, 64, 4
    $region17: #{tpu_custom_call.1} parent=1 // pred_fallthru
      _
    // Predicated region
    $region18: #{tpu_custom_call.1} parent=1 // pred_check
      _
    $region19: #{tpu_custom_call.1} parent=1 // pred_check_branch
      %57 = sbr.rel (0) target = $region21
    $region20: #{tpu_custom_call.1} parent=1 // pred_region
      %59 = vsyncadd [#allocation9], 0
      %s60 = sshll.u32 %s4, 4
      %s61 = int_to_ptr.hbm [resolvable:$true] %s60
      %s62 = sshll.u32 [#allocation8], 4
      %s63 = int_to_ptr.vmem [resolvable:$true] %s62
      %68 = dma.hbm_to_vmem [thread:$0]  %s61, 512, %s63, [#allocation9], 128, 128, 8
    $region21: #{tpu_custom_call.1} parent=1 // pred_fallthru
      _
    // Predicated region
    $region22: #{tpu_custom_call.1} parent=1 // pred_check
      _
    $region23: #{tpu_custom_call.1} parent=1 // pred_check_branch
      %70 = sbr.rel (0) target = $region25
    $region24: #{tpu_custom_call.1} parent=1 // pred_region
      _
    $region25: #{tpu_custom_call.1} parent=1 // pred_fallthru
      _
    // Predicated region
    $region26: #{tpu_custom_call.1} parent=1 // pred_check
      _
    $region27: #{tpu_custom_call.1} parent=1 // pred_check_branch
      %72 = sbr.rel (0) target = $region29
    $region28: #{tpu_custom_call.1} parent=1 // pred_region
      %74 = dma.done [#allocation3], 128
    $region29: #{tpu_custom_call.1} parent=1 // pred_fallthru
      _
    // Predicated region
    $region30: #{tpu_custom_call.1} parent=1 // pred_check
      _
    $region31: #{tpu_custom_call.1} parent=1 // pred_check_branch
      %76 = sbr.rel (0) target = $region33
    $region32: #{tpu_custom_call.1} parent=1 // pred_region
      %78 = dma.done [#allocation6], 128
    $region33: #{tpu_custom_call.1} parent=1 // pred_fallthru
      _
    // Predicated region
    $region34: #{tpu_custom_call.1} parent=1 // pred_check
      _
    $region35: #{tpu_custom_call.1} parent=1 // pred_check_branch
      %80 = sbr.rel (0) target = $region37
    $region36: #{tpu_custom_call.1} parent=1 // pred_region
      %82 = dma.done [#allocation6], 256
    $region37: #{tpu_custom_call.1} parent=1 // pred_fallthru
      _
    // Predicated region
    $region38: #{tpu_custom_call.1} parent=1 // pred_check
      _
    $region39: #{tpu_custom_call.1} parent=1 // pred_check_branch
      %84 = sbr.rel (0) target = $region41
    $region40: #{tpu_custom_call.1} parent=1 // pred_region
      %86 = dma.done [#allocation9], 512
    $region41: #{tpu_custom_call.1} parent=1 // pred_fallthru
      _
    %v88 = vld [vmem:[#allocation5] sm:$0xf]
    %v89 = vld [vmem:[#allocation5 + $0x4] sm:$0xf]
    %v90 = vld [vmem:[%s2] sm:$0x1]
    %v91 = vld [vmem:[#allocation7] sm:$0xf]
    %v92 = vld [vmem:[#allocation7 + $0x4] sm:$0xf]
    %v93 = vld [vmem:[#allocation7 + $0x8] sm:$0xf]
    %v94 = vld [vmem:[#allocation7 + $0xc] sm:$0xf]
    %v95 = vld [vmem:[#allocation2] sm:$0x1]
    %v97 = vperm.slane %v90, 0
    %v101 = vunpack.c.l.b16 %v88
    %v102 = vunpack.c.l.b16 %v89
    %v103 = vpack.c.b16 %v102, %v101
    %vm105 = vcmask 130048
    %v107 = vsel %vm105, %v95, 0
    %109 = vmatpush.bf16.msra.mxu0 0
    %110 = vmatpush.bf16.msra.mxu0 0
    %111 = vmatpush.bf16.msra.mxu0 0
    %112 = vmatpush.bf16.msra.mxu0 0
    %113 = vmatpush.bf16.msra.mxu0 0
    %114 = vmatpush.bf16.msra.mxu0 0
    %115 = vmatpush.bf16.msra.mxu0 0
    %116 = vmatpush.bf16.msra.mxu0 %v103
    %117 = vmatmul.bf16.gmra.mxu0 %v107
    %v118 = vpop.f32.mrf.mxu0
    %v119 = vadd.f32 %v97, %v118
    %v120 = vpop.f32.mrf.mxu0
    %121 = vdwg.mxu0
    %s122 = scalar_lea.vmem [#allocation2], 1
    %v123 = vld [vmem:[%s122] sm:$0x1]
    %v125 = vsel %vm105, %v123, 0
    %127 = vmatpush.bf16.msra.mxu0 0
    %128 = vmatpush.bf16.msra.mxu0 0
    %129 = vmatpush.bf16.msra.mxu0 0
    %130 = vmatpush.bf16.msra.mxu0 0
    %131 = vmatpush.bf16.msra.mxu0 0
    %132 = vmatpush.bf16.msra.mxu0 0
    %133 = vmatpush.bf16.msra.mxu0 0
    %134 = vmatpush.bf16.msra.mxu0 %v103
    %135 = vmatmul.bf16.gmra.mxu0 %v125
    %v136 = vpop.f32.mrf.mxu0
    %v137 = vadd.f32 %v97, %v136
    %v138 = vpop.f32.mrf.mxu0
    %139 = vdwg.mxu0
    %s140 = scalar_lea.vmem [#allocation2], 2
    %v141 = vld [vmem:[%s140] sm:$0x1]
    %v143 = vsel %vm105, %v141, 0
    %145 = vmatpush.bf16.msra.mxu0 0
    %146 = vmatpush.bf16.msra.mxu0 0
    %147 = vmatpush.bf16.msra.mxu0 0
    %148 = vmatpush.bf16.msra.mxu0 0
    %149 = vmatpush.bf16.msra.mxu0 0
    %150 = vmatpush.bf16.msra.mxu0 0
    %151 = vmatpush.bf16.msra.mxu0 0
    %152 = vmatpush.bf16.msra.mxu0 %v103
    %153 = vmatmul.bf16.gmra.mxu0 %v143
    %v154 = vpop.f32.mrf.mxu0
    %v155 = vadd.f32 %v97, %v154
    %v156 = vpop.f32.mrf.mxu0
    %157 = vdwg.mxu0
    %s158 = scalar_lea.vmem [#allocation2], 3
    %v159 = vld [vmem:[%s158] sm:$0x1]
    %v161 = vsel %vm105, %v159, 0
    %163 = vmatpush.bf16.msra.mxu0 0
    %164 = vmatpush.bf16.msra.mxu0 0
    %165 = vmatpush.bf16.msra.mxu0 0
    %166 = vmatpush.bf16.msra.mxu0 0
    %167 = vmatpush.bf16.msra.mxu0 0
    %168 = vmatpush.bf16.msra.mxu0 0
    %169 = vmatpush.bf16.msra.mxu0 0
    %170 = vmatpush.bf16.msra.mxu0 %v103
    %171 = vmatmul.bf16.gmra.mxu0 %v161
    %v172 = vpop.f32.mrf.mxu0
    %v173 = vadd.f32 %v97, %v172
    %v174 = vpop.f32.mrf.mxu0
    %175 = vdwg.mxu0
    %s176 = scalar_lea.vmem [#allocation2], 4
    %v177 = vld [vmem:[%s176] sm:$0x1]
    %v179 = vsel %vm105, %v177, 0
    %181 = vmatpush.bf16.msra.mxu0 0
    %182 = vmatpush.bf16.msra.mxu0 0
    %183 = vmatpush.bf16.msra.mxu0 0
    %184 = vmatpush.bf16.msra.mxu0 0
    %185 = vmatpush.bf16.msra.mxu0 0
    %186 = vmatpush.bf16.msra.mxu0 0
    %187 = vmatpush.bf16.msra.mxu0 0
    %188 = vmatpush.bf16.msra.mxu0 %v103
    %189 = vmatmul.bf16.gmra.mxu0 %v179
    %v190 = vpop.f32.mrf.mxu0
    %v191 = vadd.f32 %v97, %v190
    %v192 = vpop.f32.mrf.mxu0
    %193 = vdwg.mxu0
    %s194 = scalar_lea.vmem [#allocation2], 5
    %v195 = vld [vmem:[%s194] sm:$0x1]
    %v197 = vsel %vm105, %v195, 0
    %199 = vmatpush.bf16.msra.mxu0 0
    %200 = vmatpush.bf16.msra.mxu0 0
    %201 = vmatpush.bf16.msra.mxu0 0
    %202 = vmatpush.bf16.msra.mxu0 0
    %203 = vmatpush.bf16.msra.mxu0 0
    %204 = vmatpush.bf16.msra.mxu0 0
    %205 = vmatpush.bf16.msra.mxu0 0
    %206 = vmatpush.bf16.msra.mxu0 %v103
    %207 = vmatmul.bf16.gmra.mxu0 %v197
    %v208 = vpop.f32.mrf.mxu0
    %v209 = vadd.f32 %v97, %v208
    %v210 = vpop.f32.mrf.mxu0
    %211 = vdwg.mxu0
    %s212 = scalar_lea.vmem [#allocation2], 6
    %v213 = vld [vmem:[%s212] sm:$0x1]
    %v215 = vsel %vm105, %v213, 0
    %217 = vmatpush.bf16.msra.mxu0 0
    %218 = vmatpush.bf16.msra.mxu0 0
    %219 = vmatpush.bf16.msra.mxu0 0
    %220 = vmatpush.bf16.msra.mxu0 0
    %221 = vmatpush.bf16.msra.mxu0 0
    %222 = vmatpush.bf16.msra.mxu0 0
    %223 = vmatpush.bf16.msra.mxu0 0
    %224 = vmatpush.bf16.msra.mxu0 %v103
    %225 = vmatmul.bf16.gmra.mxu0 %v215
    %v226 = vpop.f32.mrf.mxu0
    %v227 = vadd.f32 %v97, %v226
    %v228 = vpop.f32.mrf.mxu0
    %229 = vdwg.mxu0
    %s230 = scalar_lea.vmem [#allocation2], 7
    %v231 = vld [vmem:[%s230] sm:$0x1]
    %v233 = vsel %vm105, %v231, 0
    %235 = vmatpush.bf16.msra.mxu0 0
    %236 = vmatpush.bf16.msra.mxu0 0
    %237 = vmatpush.bf16.msra.mxu0 0
    %238 = vmatpush.bf16.msra.mxu0 0
    %239 = vmatpush.bf16.msra.mxu0 0
    %240 = vmatpush.bf16.msra.mxu0 0
    %241 = vmatpush.bf16.msra.mxu0 0
    %242 = vmatpush.bf16.msra.mxu0 %v103
    %243 = vmatmul.bf16.gmra.mxu0 %v233
    %v244 = vpop.f32.mrf.mxu0
    %v245 = vadd.f32 %v97, %v244
    %v246 = vpop.f32.mrf.mxu0
    %247 = vdwg.mxu0
    %v248 = vtanh.pop %v119
    %v249 = vpack.c.bf16 %v248, %v248
    %v254 = vunpack.c.l.b16 %v91
    %v255 = vunpack.c.l.b16 %v92
    %v256 = vunpack.c.l.b16 %v93
    %v257 = vunpack.c.l.b16 %v94
    %v258 = vpack.c.b16 %v255, %v254
    %v259 = vpack.c.b16 %v257, %v256
    %vm262 = vcmask 261120
    %v264 = vsel %vm262, %v249, 0
    %266 = vmatpush.bf16.msra.mxu0 0
    %267 = vmatpush.bf16.msra.mxu0 0
    %268 = vmatpush.bf16.msra.mxu0 0
    %269 = vmatpush.bf16.msra.mxu0 0
    %270 = vmatpush.bf16.msra.mxu0 0
    %271 = vmatpush.bf16.msra.mxu0 0
    %272 = vmatpush.bf16.msra.mxu0 %v259
    %273 = vmatpush.bf16.msra.mxu0 %v258
    %274 = vmatmul.bf16.gmra.mxu0 %v264
    %v275 = vpop.f32.mrf.mxu0
    %v276 = vadd.f32 0.0, %v275
    %v277 = vpop.f32.mrf.mxu0
    %278 = vdwg.mxu0
    %v279 = vadd.f32 %v137, %v276
    %v280 = vtanh.pop %v279
    %v281 = vpack.c.bf16 %v280, %v280
    %v283 = vsel %vm262, %v281, 0
    %285 = vmatpush.bf16.msra.mxu0 0
    %286 = vmatpush.bf16.msra.mxu0 0
    %287 = vmatpush.bf16.msra.mxu0 0
    %288 = vmatpush.bf16.msra.mxu0 0
    %289 = vmatpush.bf16.msra.mxu0 0
    %290 = vmatpush.bf16.msra.mxu0 0
    %291 = vmatpush.bf16.msra.mxu0 %v259
    %292 = vmatpush.bf16.msra.mxu0 %v258
    %293 = vmatmul.bf16.gmra.mxu0 %v283
    %v294 = vpop.f32.mrf.mxu0
    %v295 = vadd.f32 0.0, %v294
    %v296 = vpop.f32.mrf.mxu0
    %297 = vdwg.mxu0
    %v298 = vadd.f32 %v155, %v295
    %v299 = vtanh.pop %v298
    %v300 = vpack.c.bf16 %v299, %v299
    %v302 = vsel %vm262, %v300, 0
    %304 = vmatpush.bf16.msra.mxu0 0
    %305 = vmatpush.bf16.msra.mxu0 0
    %306 = vmatpush.bf16.msra.mxu0 0
    %307 = vmatpush.bf16.msra.mxu0 0
    %308 = vmatpush.bf16.msra.mxu0 0
    %309 = vmatpush.bf16.msra.mxu0 0
    %310 = vmatpush.bf16.msra.mxu0 %v259
    %311 = vmatpush.bf16.msra.mxu0 %v258
    %312 = vmatmul.bf16.gmra.mxu0 %v302
    %v313 = vpop.f32.mrf.mxu0
    %v314 = vadd.f32 0.0, %v313
    %v315 = vpop.f32.mrf.mxu0
    %316 = vdwg.mxu0
    %v317 = vadd.f32 %v173, %v314
    %v318 = vtanh.pop %v317
    %v319 = vpack.c.bf16 %v318, %v318
    %v321 = vsel %vm262, %v319, 0
    %323 = vmatpush.bf16.msra.mxu0 0
    %324 = vmatpush.bf16.msra.mxu0 0
    %325 = vmatpush.bf16.msra.mxu0 0
    %326 = vmatpush.bf16.msra.mxu0 0
    %327 = vmatpush.bf16.msra.mxu0 0
    %328 = vmatpush.bf16.msra.mxu0 0
    %329 = vmatpush.bf16.msra.mxu0 %v259
    %330 = vmatpush.bf16.msra.mxu0 %v258
    %331 = vmatmul.bf16.gmra.mxu0 %v321
    %v332 = vpop.f32.mrf.mxu0
    %v333 = vadd.f32 0.0, %v332
    %v334 = vpop.f32.mrf.mxu0
    %335 = vdwg.mxu0
    %v336 = vadd.f32 %v191, %v333
    %v337 = vtanh.pop %v336
    %v338 = vpack.c.bf16 %v337, %v337
    %v340 = vsel %vm262, %v338, 0
    %342 = vmatpush.bf16.msra.mxu0 0
    %343 = vmatpush.bf16.msra.mxu0 0
    %344 = vmatpush.bf16.msra.mxu0 0
    %345 = vmatpush.bf16.msra.mxu0 0
    %346 = vmatpush.bf16.msra.mxu0 0
    %347 = vmatpush.bf16.msra.mxu0 0
    %348 = vmatpush.bf16.msra.mxu0 %v259
    %349 = vmatpush.bf16.msra.mxu0 %v258
    %350 = vmatmul.bf16.gmra.mxu0 %v340
    %v351 = vpop.f32.mrf.mxu0
    %v352 = vadd.f32 0.0, %v351
    %v353 = vpop.f32.mrf.mxu0
    %354 = vdwg.mxu0
    %v355 = vadd.f32 %v209, %v352
    %v356 = vtanh.pop %v355
    %v357 = vpack.c.bf16 %v356, %v356
    %v359 = vsel %vm262, %v357, 0
    %361 = vmatpush.bf16.msra.mxu0 0
    %362 = vmatpush.bf16.msra.mxu0 0
    %363 = vmatpush.bf16.msra.mxu0 0
    %364 = vmatpush.bf16.msra.mxu0 0
    %365 = vmatpush.bf16.msra.mxu0 0
    %366 = vmatpush.bf16.msra.mxu0 0
    %367 = vmatpush.bf16.msra.mxu0 %v259
    %368 = vmatpush.bf16.msra.mxu0 %v258
    %369 = vmatmul.bf16.gmra.mxu0 %v359
    %v370 = vpop.f32.mrf.mxu0
    %v371 = vadd.f32 0.0, %v370
    %v372 = vpop.f32.mrf.mxu0
    %373 = vdwg.mxu0
    %v374 = vadd.f32 %v227, %v371
    %v375 = vtanh.pop %v374
    %v376 = vpack.c.bf16 %v375, %v375
    %v378 = vsel %vm262, %v376, 0
    %380 = vmatpush.bf16.msra.mxu0 0
    %381 = vmatpush.bf16.msra.mxu0 0
    %382 = vmatpush.bf16.msra.mxu0 0
    %383 = vmatpush.bf16.msra.mxu0 0
    %384 = vmatpush.bf16.msra.mxu0 0
    %385 = vmatpush.bf16.msra.mxu0 0
    %386 = vmatpush.bf16.msra.mxu0 %v259
    %387 = vmatpush.bf16.msra.mxu0 %v258
    %388 = vmatmul.bf16.gmra.mxu0 %v378
    %v389 = vpop.f32.mrf.mxu0
    %v390 = vadd.f32 0.0, %v389
    %v391 = vpop.f32.mrf.mxu0
    %392 = vdwg.mxu0
    %v393 = vadd.f32 %v245, %v390
    %v394 = vtanh.pop %v393
    %v395 = vld [vmem:[#allocation8] sm:$0xff]
    %v396 = vld [vmem:[#allocation8 + $0x8] sm:$0xff]
    %v397 = vld [vmem:[#allocation8 + $0x10] sm:$0xff]
    %v398 = vld [vmem:[#allocation8 + $0x18] sm:$0xff]
    %v399 = vld [vmem:[%s5] sm:$0x1]
    %v401 = vperm.slane %v399, 0
    %v404 = vsel %vm262, %v394, 0
    %406 = vmatpush.msra.mxu0 0.0
    %407 = vmatpush.msra.mxu0 0.0
    %408 = vmatpush.msra.mxu0 0.0
    %409 = vmatpush.msra.mxu0 0.0
    %410 = vmatpush.msra.mxu0 0.0
    %411 = vmatpush.msra.mxu0 0.0
    %412 = vmatpush.msra.mxu0 0.0
    %413 = vmatpush.msra.mxu0 0.0
    %414 = vmatpush.msra.mxu0 0.0
    %415 = vmatpush.msra.mxu0 0.0
    %416 = vmatpush.msra.mxu0 0.0
    %417 = vmatpush.msra.mxu0 0.0
    %418 = vmatpush.msra.mxu0 %v398
    %419 = vmatpush.msra.mxu0 %v397
    %420 = vmatpush.msra.mxu0 %v396
    %421 = vmatpush.msra.mxu0 %v395
    %422 = vmatmul.f32.gmra.mxu0 %v404
    %v423 = vpop.f32.mrf.mxu0
    %v424 = vadd.f32 %v401, %v423
    %425 = vdwg.mxu0
    %426 = vst [vmem:[#allocation10] sm:$0x3] %v424
    // Predicated region
    $region42: #{tpu_custom_call.1} parent=1 // pred_check
      _
    $region43: #{tpu_custom_call.1} parent=1 // pred_check_branch
      %428 = sbr.rel (0) target = $region45
    $region44: #{tpu_custom_call.1} parent=1 // pred_region
      %430 = vsyncadd [#allocation4], 0
      %s432 = sshll.u32 [#allocation10], 4
      %s433 = int_to_ptr.vmem [resolvable:$true] %s432
      %s434 = sshll.u32 %s6, 4
      %s435 = int_to_ptr.hbm [resolvable:$true] %s434
      %437 = dma.vmem_to_hbm [thread:$0]  %s433, 32, %s435, [#allocation4]
    $region45: #{tpu_custom_call.1} parent=1 // pred_fallthru
      _
    // Predicated region
    $region46: #{tpu_custom_call.1} parent=1 // pred_check
      _
    $region47: #{tpu_custom_call.1} parent=1 // pred_check_branch
      %439 = sbr.rel (0) target = $region49
    $region48: #{tpu_custom_call.1} parent=1 // pred_region
      %441 = dma.done [#allocation4], 32
    $region49: #{tpu_custom_call.1} parent=1 // pred_fallthru
      _
    %442 = vsyncpa [#allocation3], 1
    %443 = vsyncpa [#allocation6], 1
    %444 = vsyncpa [#allocation9], 1
    %445 = vsyncpa [#allocation4], 1

</llo_original>
